<compile_context>
chip_gen: v7x
topology: tpu7x:2x2x1
jax: 0.10.0
libtpu: 0.0.40
codegen_flags: <defaults>
</compile_context>

<pallas_src>
import jax
import jax.numpy as jnp
from jax.experimental import pallas as pl
from jax.experimental.pallas import tpu as pltpu


def _soft_xent_kernel(yhat_ref, y_ref, num_ref, den_ref):
    logits = yhat_ref[...].astype(jnp.float32)   # (C, t_rows, 128)
    tgt = y_ref[...].astype(jnp.float32)         # (C, t_rows, 128)

    # log_softmax over the class axis (axis 0): element-wise max/add across the
    # C vreg planes (VPU); exp/log go to the EUP.
    m = jnp.max(logits, axis=0, keepdims=True)                         # (1, t_rows, 128)
    lse = m + jnp.log(jnp.sum(jnp.exp(logits - m), axis=0, keepdims=True))
    logp = logits - lse                                                # (C, t_rows, 128)

    num_tile = jnp.sum(tgt * logp, axis=0)       # (t_rows, 128)
    den_tile = jnp.sum(tgt, axis=0)              # (t_rows, 128)

    # Fold rows onto one sublane -> lane-dense (1, 128) partial per block (one
    # unmasked 128-lane store each); cross-block reduction finishes in JAX.
    num_ref[...] = jnp.sum(num_tile, axis=0, keepdims=True)
    den_ref[...] = jnp.sum(den_tile, axis=0, keepdims=True)


def soft_cross_entropy_loss(y_hat, y, target_tile_bytes=2 << 20):
    """y_hat: (N, C, H, W) logits; y: (N, C, H, W) soft target weights."""
    N, C, H, W = y_hat.shape
    assert y.shape == y_hat.shape
    HW = H * W
    itemsize = jnp.dtype(y_hat.dtype).itemsize

    yhat_f = y_hat.reshape(N, C, HW)
    y_f = y.reshape(N, C, HW)

    # Pad the pixel axis to a multiple of 128 lanes.  Zero-padding is exact:
    # y == 0 there and log_softmax of an all-zero logit column is finite.
    hw_pad = pl.cdiv(HW, 128) * 128
    if hw_pad != HW:
        # TODO(synk): this pad is an extra HBM pass; only hit when H*W % 128 != 0.
        pad = ((0, 0), (0, 0), (0, hw_pad - HW))
        yhat_f = jnp.pad(yhat_f, pad)
        y_f = jnp.pad(y_f, pad)

    rows = hw_pad // 128

    # Rows-per-tile from the per-input byte budget (adaptive to C and dtype).
    rows_target = max(8, target_tile_bytes // (C * 128 * itemsize))
    if rows <= rows_target:
        t_rows = rows                      # full (padded) spatial extent per step
    else:
        rows_cap = (rows_target // 8) * 8
        t_rows = 0
        # Prefer a multiple-of-8 divisor of `rows` (no remainder tile, no mask).
        for cand in range(rows_cap, 7, -8):
            if rows % cand == 0:
                t_rows = cand
                break
        if t_rows == 0:
            # No clean divisor: round to a multiple of 8 and zero-pad the rows.
            t_rows = rows_cap
            rows_padded = pl.cdiv(rows, t_rows) * t_rows
            pad = ((0, 0), (0, 0), (0, (rows_padded - rows) * 128))
            yhat_f = jnp.pad(yhat_f, pad)
            y_f = jnp.pad(y_f, pad)
            rows = rows_padded
    num_t = rows // t_rows

    yhat_r = yhat_f.reshape(N, C, rows, 128)
    y_r = y_f.reshape(N, C, rows, 128)

    # Explicit VMEM accounting: 2 inputs x 2 pipeline buffers + f32 working set.
    tile_in_bytes = C * t_rows * 128 * itemsize
    tile_f32_bytes = C * t_rows * 128 * 4
    vmem_limit = int(min(64 << 20,
                         max(32 << 20, 4 * tile_in_bytes + 6 * tile_f32_bytes)))

    # Advisory cost hint so XLA can overlap surrounding ops with this
    # memory-bound custom call.
    elems = N * C * HW
    cost = pl.CostEstimate(
        flops=8 * elems,
        transcendentals=elems,
        bytes_accessed=2 * elems * itemsize + 2 * N * num_t * 128 * 4,
    )

    in_idx = lambda n, t: (n, 0, t, 0)
    out_idx = lambda n, t: (n, t, 0, 0)
    part_shape = jax.ShapeDtypeStruct((N, num_t, 1, 128), jnp.float32)

    num_p, den_p = pl.pallas_call(
        _soft_xent_kernel,
        out_shape=(part_shape, part_shape),
        grid_spec=pltpu.PrefetchScalarGridSpec(
            num_scalar_prefetch=0,
            grid=(N, num_t),
            in_specs=[
                pl.BlockSpec((None, C, t_rows, 128), in_idx),
                pl.BlockSpec((None, C, t_rows, 128), in_idx),
            ],
            out_specs=[
                pl.BlockSpec((None, None, 1, 128), out_idx),
                pl.BlockSpec((None, None, 1, 128), out_idx),
            ],
        ),
        compiler_params=pltpu.CompilerParams(
            dimension_semantics=("parallel", "parallel"),
            vmem_limit_bytes=vmem_limit,
        ),
        cost_estimate=cost,
    )(yhat_r, y_r)

    total_num = jnp.sum(num_p)
    total_den = jnp.sum(den_p)
    return -total_num / total_den


def soft_cross_entropy_loss_ref(y_hat, y):
    p = jax.nn.log_softmax(y_hat, axis=1)
    return -(y * p).sum() / y.sum()


if __name__ == "__main__":
    key = jax.random.PRNGKey(0)
    k1, k2 = jax.random.split(key)

    N, C, H, W = 2, 4, 16, 16
    y_hat = jax.random.normal(k1, (N, C, H, W), dtype=jnp.float32)
    # Soft per-pixel class weights (e.g. label-smoothed probabilities).
    y = jax.nn.softmax(jax.random.normal(k2, (N, C, H, W), dtype=jnp.float32),
                       axis=1)

    loss = jax.block_until_ready(jax.jit(soft_cross_entropy_loss)(y_hat, y))
    ref = soft_cross_entropy_loss_ref(y_hat, y)

    assert jnp.allclose(loss, ref, atol=1e-5, rtol=1e-5), (loss, ref)
    print("KERNEL_OK")
</pallas_src>

<mosaic_0001>
module attributes {stable_mosaic.version = 11 : i64} {
  func.func @_soft_xent_kernel(%arg0: i32, %arg1: i32, %arg2: memref<1x4x2x128xf32, #tpu.memory_space<vmem>>, %arg3: memref<1x4x2x128xf32, #tpu.memory_space<vmem>>, %arg4: memref<1x1x1x128xf32, #tpu.memory_space<vmem>>, %arg5: memref<1x1x1x128xf32, #tpu.memory_space<vmem>>) attributes {dimension_semantics = [#tpu.dimension_semantics<parallel>, #tpu.dimension_semantics<parallel>], iteration_bounds = array<i64: 2, 1>, scalar_prefetch = 0 : i64, scratch_operands = 0 : i64, tpu.core_type = #tpu.core_type<tc>, window_params = [{transform_indices = @transform_0, window_bounds = array<i64: 1, 4, 2, 128>}, {transform_indices = @transform_1, window_bounds = array<i64: 1, 4, 2, 128>}, {transform_indices = @transform_2, window_bounds = array<i64: 1, 1, 1, 128>}, {transform_indices = @transform_3, window_bounds = array<i64: 1, 1, 1, 128>}]} {
    %c0 = arith.constant 0 : index
    %c0_0 = arith.constant 0 : index
    %c0_1 = arith.constant 0 : index
    %c0_2 = arith.constant 0 : index
    %0 = vector.load %arg2[%c0, %c0_0, %c0_1, %c0_2] : memref<1x4x2x128xf32, #tpu.memory_space<vmem>>, vector<1x4x2x128xf32>
    %1 = vector.shape_cast %0 : vector<1x4x2x128xf32> to vector<4x2x128xf32>
    %c0_3 = arith.constant 0 : index
    %c0_4 = arith.constant 0 : index
    %c0_5 = arith.constant 0 : index
    %c0_6 = arith.constant 0 : index
    %2 = vector.load %arg3[%c0_3, %c0_4, %c0_5, %c0_6] : memref<1x4x2x128xf32, #tpu.memory_space<vmem>>, vector<1x4x2x128xf32>
    %3 = vector.shape_cast %2 : vector<1x4x2x128xf32> to vector<4x2x128xf32>
    %cst = arith.constant dense<0xFF800000> : vector<2x128xf32>
    %4 = vector.multi_reduction <maximumf>, %1, %cst [0] : vector<4x2x128xf32> to vector<2x128xf32>
    %5 = vector.shape_cast %4 : vector<2x128xf32> to vector<1x2x128xf32>
    %6 = vector.broadcast %5 : vector<1x2x128xf32> to vector<4x2x128xf32>
    %7 = arith.subf %1, %6 : vector<4x2x128xf32>
    %8 = math.exp %7 : vector<4x2x128xf32>
    %cst_7 = arith.constant dense<0.000000e+00> : vector<2x128xf32>
    %9 = vector.multi_reduction <add>, %8, %cst_7 [0] : vector<4x2x128xf32> to vector<2x128xf32>
    %10 = vector.shape_cast %9 : vector<2x128xf32> to vector<1x2x128xf32>
    %11 = math.log %10 : vector<1x2x128xf32>
    %12 = arith.addf %5, %11 : vector<1x2x128xf32>
    %13 = vector.broadcast %12 : vector<1x2x128xf32> to vector<4x2x128xf32>
    %14 = arith.subf %1, %13 : vector<4x2x128xf32>
    %15 = arith.mulf %3, %14 : vector<4x2x128xf32>
    %cst_8 = arith.constant dense<0.000000e+00> : vector<2x128xf32>
    %16 = vector.multi_reduction <add>, %15, %cst_8 [0] : vector<4x2x128xf32> to vector<2x128xf32>
    %cst_9 = arith.constant dense<0.000000e+00> : vector<2x128xf32>
    %17 = vector.multi_reduction <add>, %3, %cst_9 [0] : vector<4x2x128xf32> to vector<2x128xf32>
    %cst_10 = arith.constant dense<0.000000e+00> : vector<128xf32>
    %18 = vector.multi_reduction <add>, %16, %cst_10 [0] : vector<2x128xf32> to vector<128xf32>
    %19 = vector.shape_cast %18 : vector<128xf32> to vector<1x128xf32>
    %c0_11 = arith.constant 0 : index
    %c0_12 = arith.constant 0 : index
    %c0_13 = arith.constant 0 : index
    %c0_14 = arith.constant 0 : index
    %20 = vector.load %arg4[%c0_11, %c0_12, %c0_13, %c0_14] : memref<1x1x1x128xf32, #tpu.memory_space<vmem>>, vector<1x1x1x128xf32>
    %21 = vector.shape_cast %20 : vector<1x1x1x128xf32> to vector<1x128xf32>
    %22 = vector.shape_cast %19 : vector<1x128xf32> to vector<1x1x1x128xf32>
    tpu.vector_store %arg4[%c0_11, %c0_12, %c0_13, %c0_14], %22 {strides = array<i32>} : memref<1x1x1x128xf32, #tpu.memory_space<vmem>>, vector<1x1x1x128xf32>,
    %cst_15 = arith.constant dense<0.000000e+00> : vector<128xf32>
    %23 = vector.multi_reduction <add>, %17, %cst_15 [0] : vector<2x128xf32> to vector<128xf32>
    %24 = vector.shape_cast %23 : vector<128xf32> to vector<1x128xf32>
    %c0_16 = arith.constant 0 : index
    %c0_17 = arith.constant 0 : index
    %c0_18 = arith.constant 0 : index
    %c0_19 = arith.constant 0 : index
    %25 = vector.load %arg5[%c0_16, %c0_17, %c0_18, %c0_19] : memref<1x1x1x128xf32, #tpu.memory_space<vmem>>, vector<1x1x1x128xf32>
    %26 = vector.shape_cast %25 : vector<1x1x1x128xf32> to vector<1x128xf32>
    %27 = vector.shape_cast %24 : vector<1x128xf32> to vector<1x1x1x128xf32>
    tpu.vector_store %arg5[%c0_16, %c0_17, %c0_18, %c0_19], %27 {strides = array<i32>} : memref<1x1x1x128xf32, #tpu.memory_space<vmem>>, vector<1x1x1x128xf32>,
    return
  }
  func.func @transform_0(%arg0: i32, %arg1: i32) -> (i32, i32, i32, i32) {
    %c0_i32 = arith.constant 0 : i32
    %c0_i32_0 = arith.constant 0 : i32
    %c0_i32_1 = arith.constant 0 : i32
    return %arg0, %c0_i32, %arg1, %c0_i32_0 : i32, i32, i32, i32
  }
  func.func @transform_1(%arg0: i32, %arg1: i32) -> (i32, i32, i32, i32) {
    %c0_i32 = arith.constant 0 : i32
    %c0_i32_0 = arith.constant 0 : i32
    %c0_i32_1 = arith.constant 0 : i32
    return %arg0, %c0_i32, %arg1, %c0_i32_0 : i32, i32, i32, i32
  }
  func.func @transform_2(%arg0: i32, %arg1: i32) -> (i32, i32, i32, i32) {
    %c0_i32 = arith.constant 0 : i32
    %c0_i32_0 = arith.constant 0 : i32
    %c0_i32_1 = arith.constant 0 : i32
    return %arg0, %arg1, %c0_i32, %c0_i32_0 : i32, i32, i32, i32
  }
  func.func @transform_3(%arg0: i32, %arg1: i32) -> (i32, i32, i32, i32) {
    %c0_i32 = arith.constant 0 : i32
    %c0_i32_0 = arith.constant 0 : i32
    %c0_i32_1 = arith.constant 0 : i32
    return %arg0, %arg1, %c0_i32, %c0_i32_0 : i32, i32, i32, i32
  }
}

</mosaic_0001>

<llo_original>
// kernel: soft_cross_entropy_loss.1
$region0: #{soft_cross_entropy_loss.1}
  #allocation0 [shape = 'u32[]', space=smem, size = 0x4, offset = 0x4, fixed_abs, tag = 'smem constant byte address 0x4 - core index']
  #allocation1 [shape = 'u32[144,128]{1,0:T(1,128)}', space=vmem, size = 0x12000, scoped, tag = 'internal scratch']
  %s0 = inlined_call_operand.vmem [shape: f32[2,4,2,128], index: 0, kind: input, shape index: {}]
  %s1 = inlined_call_operand.vmem [shape: f32[2,4,2,128], index: 1, kind: input, shape index: {}]
  %s2 = inlined_call_operand.vmem [shape: f32[2,1,1,128], index: 2, kind: output, shape index: {0}]
  %s3 = inlined_call_operand.vmem [shape: f32[2,1,1,128], index: 3, kind: output, shape index: {1}]
  %4 = xla_tuple %s2, %s3
  %s5 = sld [smem:[#allocation0]]
  $region49: #{soft_cross_entropy_loss.1} parent=0
    _
  %s7 = ssub.s32 1, %s5
  %s8 = scalar_select 0, %s7, %s5
  loop: start=0, step=1, limit=4
  $region2: #{soft_cross_entropy_loss.1} parent=0 // loop_pre_header
    _
  $region3: #{soft_cross_entropy_loss.1} parent=0 // loop_header
    %s10 = sphi 0, %s14
    %p11 = scmp.ge.s32.totalorder %s10, 4
    %s17 = sphi 0, %s29
    %s18 = sphi 0, %s25
    %s19 = sphi 0, %s17
    %s20 = sphi 0, %s18
    %s21 = sphi 0, %s19
    %s22 = sphi 0, %s20
    %s34 = sphi 0, %s36
    %s37 = sphi 0, %s34
    %s38 = sphi 0, %s37
    %s54 = sphi 0, %s38
    %s62 = sphi 0, %s64
    %s65 = sphi 0, %s62
    %s66 = sphi 0, %s65
    %s82 = sphi 0, %s66
    %s90 = sphi 0, %s92
    %s93 = sphi 0, %s90
    %s94 = sphi 0, %s93
    %s110 = sphi 0, %s94
    %s118 = sphi 0, %s120
    %s121 = sphi 0, %s118
    %s122 = sphi 0, %s121
    %s138 = sphi 0, %s122
  $region4: #{soft_cross_entropy_loss.1} parent=0 // loop_header_branch
    %13 = sbr.rel (%p11) target = $region8
  $region5: #{soft_cross_entropy_loss.1} parent=0 // loop_body
    %s15 = ssub.s32 %s10, 1
    %s16 = ssub.s32 %s10, 2
    %s23 = sadd.s32 1, %s18
    %p24 = scmp.ge.s32.totalorder %s23, 1
    %s25 = scalar_select %p24, 0, %s23
    %s26 = sadd.s32 1, %s17
    %s27 = scalar_select %p24, %s26, %s17
    %p28 = scmp.ge.s32.totalorder %s27, 2
    %s29 = scalar_select %p28, 0, %s27
    %s30 = ssub.s32 %s17, %s29
    %s31 = ssub.s32 %s18, %s25
    %s32 = sor.u32 %s30, %s31
    %p33 = scmp.eq.s32.totalorder %s32, 0
    %s35 = sadd.s32 %s34, 1
    %s36 = scalar_select %p33, %s34, %s35
    %p39 = pneg %p33
    %p40 = scmp.eq.s32.totalorder %s10, 1
    %p41 = por %p39, %p40
    %p42 = scmp.ne.s32.totalorder %s34, %s37
    %p43 = scmp.eq.s32.totalorder %s10, 0
    %p44 = por %p42, %p43
    %p45 = scmp.ne.s32.totalorder %s34, %s37
    %p46 = scmp.eq.s32.totalorder %s15, 1
    %p47 = por %p45, %p46
    %p48 = scmp.ne.s32.totalorder %s37, %s38
    %p49 = scmp.eq.s32.totalorder %s15, 0
    %p50 = por %p48, %p49
    %p51 = scmp.ne.s32.totalorder %s37, %s38
    %p52 = scmp.eq.s32.totalorder %s16, 1
    %p53 = por %p51, %p52
    %p55 = scmp.ne.s32.totalorder %s38, %s54
    %p56 = scmp.eq.s32.totalorder %s16, 0
    %p57 = por %p55, %p56
    %s58 = ssub.s32 %s17, %s29
    %s59 = ssub.s32 %s18, %s25
    %s60 = sor.u32 %s58, %s59
    %p61 = scmp.eq.s32.totalorder %s60, 0
    %s63 = sadd.s32 %s62, 1
    %s64 = scalar_select %p61, %s62, %s63
    %p67 = pneg %p61
    %p68 = scmp.eq.s32.totalorder %s10, 1
    %p69 = por %p67, %p68
    %p70 = scmp.ne.s32.totalorder %s62, %s65
    %p71 = scmp.eq.s32.totalorder %s10, 0
    %p72 = por %p70, %p71
    %p73 = scmp.ne.s32.totalorder %s62, %s65
    %p74 = scmp.eq.s32.totalorder %s15, 1
    %p75 = por %p73, %p74
    %p76 = scmp.ne.s32.totalorder %s65, %s66
    %p77 = scmp.eq.s32.totalorder %s15, 0
    %p78 = por %p76, %p77
    %p79 = scmp.ne.s32.totalorder %s65, %s66
    %p80 = scmp.eq.s32.totalorder %s16, 1
    %p81 = por %p79, %p80
    %p83 = scmp.ne.s32.totalorder %s66, %s82
    %p84 = scmp.eq.s32.totalorder %s16, 0
    %p85 = por %p83, %p84
    %s86 = ssub.s32 %s17, %s29
    %s87 = ssub.s32 %s18, %s25
    %s88 = sor.u32 %s86, %s87
    %p89 = scmp.eq.s32.totalorder %s88, 0
    %s91 = sadd.s32 %s90, 1
    %s92 = scalar_select %p89, %s90, %s91
    %p95 = pneg %p89
    %p96 = scmp.eq.s32.totalorder %s10, 1
    %p97 = por %p95, %p96
    %p98 = scmp.ne.s32.totalorder %s90, %s93
    %p99 = scmp.eq.s32.totalorder %s10, 0
    %p100 = por %p98, %p99
    %p101 = scmp.ne.s32.totalorder %s90, %s93
    %p102 = scmp.eq.s32.totalorder %s15, 1
    %p103 = por %p101, %p102
    %p104 = scmp.ne.s32.totalorder %s93, %s94
    %p105 = scmp.eq.s32.totalorder %s15, 0
    %p106 = por %p104, %p105
    %p107 = scmp.ne.s32.totalorder %s93, %s94
    %p108 = scmp.eq.s32.totalorder %s16, 1
    %p109 = por %p107, %p108
    %p111 = scmp.ne.s32.totalorder %s94, %s110
    %p112 = scmp.eq.s32.totalorder %s16, 0
    %p113 = por %p111, %p112
    %s114 = ssub.s32 %s17, %s29
    %s115 = ssub.s32 %s18, %s25
    %s116 = sor.u32 %s114, %s115
    %p117 = scmp.eq.s32.totalorder %s116, 0
    %s119 = sadd.s32 %s118, 1
    %s120 = scalar_select %p117, %s118, %s119
    %p123 = pneg %p117
    %p124 = scmp.eq.s32.totalorder %s10, 1
    %p125 = por %p123, %p124
    %p126 = scmp.ne.s32.totalorder %s118, %s121
    %p127 = scmp.eq.s32.totalorder %s10, 0
    %p128 = por %p126, %p127
    %p129 = scmp.ne.s32.totalorder %s118, %s121
    %p130 = scmp.eq.s32.totalorder %s15, 1
    %p131 = por %p129, %p130
    %p132 = scmp.ne.s32.totalorder %s121, %s122
    %p133 = scmp.eq.s32.totalorder %s15, 0
    %p134 = por %p132, %p133
    %p135 = scmp.ne.s32.totalorder %s121, %s122
    %p136 = scmp.eq.s32.totalorder %s16, 1
    %p137 = por %p135, %p136
    %p139 = scmp.ne.s32.totalorder %s122, %s138
    %p140 = scmp.eq.s32.totalorder %s16, 0
    %p141 = por %p139, %p140
    %p142 = scmp.le.s32.totalorder 1, %s10
    %p143 = scmp.lt.s32.totalorder %s10, 3
    %p144 = pnand %p142, %p143
    %p145 = pneg %p144
    // Predicated region
    $region9: #{soft_cross_entropy_loss.1} parent=5 // pred_check
      _
    $region10: #{soft_cross_entropy_loss.1} parent=5 // pred_check_branch
      %147 = sbr.rel (%p144) target = $region12
    $region11: #{soft_cross_entropy_loss.1} parent=5 // pred_region
      %s148 = ssub.s32 %s10, 1
    $region12: #{soft_cross_entropy_loss.1} parent=5 // pred_fallthru
      _
    %p149 = scmp.lt.s32.totalorder %s10, 2
    // Predicated region
    $region13: #{soft_cross_entropy_loss.1} parent=5 // pred_check
      %p150 = pneg %p149
    $region14: #{soft_cross_entropy_loss.1} parent=5 // pred_check_branch
      %152 = sbr.rel (%p150) target = $region16
    $region15: #{soft_cross_entropy_loss.1} parent=5 // pred_region
      // Predicated region
      $region17: #{soft_cross_entropy_loss.1} parent=15 // pred_check
        %p153 = pneg %p44
      $region18: #{soft_cross_entropy_loss.1} parent=15 // pred_check_branch
        %155 = sbr.rel (%p153) target = $region20
      $region19: #{soft_cross_entropy_loss.1} parent=15 // pred_region
        %p156 = scmp.lt.s32.totalorder %s17, 1
        %s157 = scalar_select %p156, %s17, 1
        %p158 = scmp.lt.s32.totalorder %s18, 0
        %s159 = scalar_select %p158, %s18, 0
        %s160 = smul.addr %s157, 4
        %s161 = sadd.s32 %s159, %s160
        %s162 = smul.addr %s161, 2
        %s163 = scalar_lea.vmem %s0, %s162
      $region20: #{soft_cross_entropy_loss.1} parent=15 // pred_fallthru
        _
      // Predicated region
      $region21: #{soft_cross_entropy_loss.1} parent=15 // pred_check
        %p164 = pneg %p72
      $region22: #{soft_cross_entropy_loss.1} parent=15 // pred_check_branch
        %166 = sbr.rel (%p164) target = $region24
      $region23: #{soft_cross_entropy_loss.1} parent=15 // pred_region
        %p167 = scmp.lt.s32.totalorder %s17, 1
        %s168 = scalar_select %p167, %s17, 1
        %p169 = scmp.lt.s32.totalorder %s18, 0
        %s170 = scalar_select %p169, %s18, 0
        %s171 = smul.addr %s168, 4
        %s172 = sadd.s32 %s170, %s171
        %s173 = smul.addr %s172, 2
        %s174 = scalar_lea.vmem %s1, %s173
      $region24: #{soft_cross_entropy_loss.1} parent=15 // pred_fallthru
        _
    $region16: #{soft_cross_entropy_loss.1} parent=5 // pred_fallthru
      _
    %p175 = scmp.le.s32.totalorder 1, %s10
    %p176 = scmp.lt.s32.totalorder %s10, 3
    %p177 = pnand %p175, %p176
    %p178 = pneg %p177
    // Predicated region
    $region25: #{soft_cross_entropy_loss.1} parent=5 // pred_check
      _
    $region26: #{soft_cross_entropy_loss.1} parent=5 // pred_check_branch
      %180 = sbr.rel (%p177) target = $region28
    $region27: #{soft_cross_entropy_loss.1} parent=5 // pred_region
      %s181 = ssub.s32 %s10, 1
      %p182 = scmp.lt.s32.totalorder %s19, 1
      %s183 = scalar_select %p182, %s19, 1
      %p184 = scmp.lt.s32.totalorder %s20, 0
      %s185 = scalar_select %p184, %s20, 0
      %s186 = smul.addr %s183, 4
      %s187 = sadd.s32 %s185, %s186
      %s188 = smul.addr %s187, 2
      %s189 = scalar_lea.vmem %s0, %s188
      %p190 = pneg %p50
      %p191 = pneg %p47
      %p192 = scmp.lt.s32.totalorder %s19, 1
      %s193 = scalar_select %p192, %s19, 1
      %p194 = scmp.lt.s32.totalorder %s20, 0
      %s195 = scalar_select %p194, %s20, 0
      %s196 = smul.addr %s193, 4
      %s197 = sadd.s32 %s195, %s196
      %s198 = smul.addr %s197, 2
      %s199 = scalar_lea.vmem %s1, %s198
      %p200 = pneg %p78
      %p201 = pneg %p75
      %p202 = pneg %p106
      %p203 = pneg %p103
      %p204 = scmp.lt.s32.totalorder %s19, 1
      %s205 = scalar_select %p204, %s19, 1
      %p206 = scmp.lt.s32.totalorder %s20, 0
      %s207 = scalar_select %p206, %s20, 0
      %s208 = sadd.s32 %s207, %s205
      %s209 = scalar_lea.vmem %s2, %s208
      %p210 = pneg %p134
      %p211 = pneg %p131
      %p212 = scmp.lt.s32.totalorder %s19, 1
      %s213 = scalar_select %p212, %s19, 1
      %p214 = scmp.lt.s32.totalorder %s20, 0
      %s215 = scalar_select %p214, %s20, 0
      %s216 = sadd.s32 %s215, %s213
      %s217 = scalar_lea.vmem %s3, %s216
      %p218 = scmp.lt.s32.totalorder %s19, 1
      %s219 = scalar_select %p218, %s19, 1
      %p220 = scmp.lt.s32.totalorder %s20, 0
      %s221 = scalar_select %p220, %s20, 0
      %s222 = smul.addr %s219, 4
      %s223 = sadd.s32 %s221, %s222
      %s224 = smul.addr %s223, 2
      %s225 = scalar_lea.vmem %s0, %s224
      %p226 = scmp.lt.s32.totalorder %s19, 1
      %s227 = scalar_select %p226, %s19, 1
      %p228 = scmp.lt.s32.totalorder %s20, 0
      %s229 = scalar_select %p228, %s20, 0
      %s230 = smul.addr %s227, 4
      %s231 = sadd.s32 %s229, %s230
      %s232 = smul.addr %s231, 2
      %s233 = scalar_lea.vmem %s1, %s232
      %p234 = scmp.lt.s32.totalorder %s19, 1
      %s235 = scalar_select %p234, %s19, 1
      %p236 = scmp.lt.s32.totalorder %s20, 0
      %s237 = scalar_select %p236, %s20, 0
      %s238 = sadd.s32 %s237, %s235
      %s239 = scalar_lea.vmem %s2, %s238
      %p240 = scmp.lt.s32.totalorder %s19, 1
      %s241 = scalar_select %p240, %s19, 1
      %p242 = scmp.lt.s32.totalorder %s20, 0
      %s243 = scalar_select %p242, %s20, 0
      %s244 = sadd.s32 %s243, %s241
      %s245 = scalar_lea.vmem %s3, %s244
      %v246 = vld [vmem:[%s225] sm:$0x3]
      %v247 = vld [vmem:[%s225 + $0x2] sm:$0x3]
      %v248 = vld [vmem:[%s225 + $0x4] sm:$0x3]
      %v249 = vld [vmem:[%s225 + $0x6] sm:$0x3]
      %v250 = vld [vmem:[%s233] sm:$0x3]
      %v251 = vld [vmem:[%s233 + $0x2] sm:$0x3]
      %v252 = vld [vmem:[%s233 + $0x4] sm:$0x3]
      %v253 = vld [vmem:[%s233 + $0x6] sm:$0x3]
      %vm254 = vcmask 1041408
      %v255 = vsel %vm254, %v246, -inf
      %v256 = vsel %vm254, %v247, -inf
      %v257 = vsel %vm254, %v248, -inf
      %v258 = vsel %vm254, %v249, -inf
      %v259 = vmax.f32 %v255, %v256
      %v260 = vmax.f32 %v257, %v258
      %v261 = vmax.f32 %v259, %v260
      %v262 = vsub.f32 %v246, %v261
      %v263 = vsub.f32 %v247, %v261
      %v264 = vsub.f32 %v248, %v261
      %v265 = vsub.f32 %v249, %v261
      %v266 = vmul.f32 %v262, 1.442695
      %v267 = vpow.pop %v266
      %v268 = vmul.f32 %v263, 1.442695
      %v269 = vpow.pop %v268
      %v270 = vmul.f32 %v264, 1.442695
      %v271 = vpow.pop %v270
      %v272 = vmul.f32 %v265, 1.442695
      %v273 = vpow.pop %v272
      %v274 = vsel %vm254, %v267, 0.0
      %v275 = vsel %vm254, %v269, 0.0
      %v276 = vadd.f32 %v274, %v275
      %v277 = vsel %vm254, %v271, 0.0
      %v278 = vadd.f32 %v276, %v277
      %v279 = vsel %vm254, %v273, 0.0
      %v280 = vadd.f32 %v278, %v279
      %v281 = vlog2.pop %v280
      %v282 = vmul.f32 %v281, 0.6931472
      %v283 = vadd.f32 %v261, %v282
      %v284 = vsub.f32 %v246, %v283
      %v285 = vsub.f32 %v247, %v283
      %v286 = vsub.f32 %v248, %v283
      %v287 = vsub.f32 %v249, %v283
      %v288 = vmul.f32 %v250, %v284
      %v289 = vmul.f32 %v251, %v285
      %v290 = vmul.f32 %v252, %v286
      %v291 = vmul.f32 %v253, %v287
      %v292 = vsel %vm254, %v288, 0.0
      %v293 = vsel %vm254, %v289, 0.0
      %v294 = vadd.f32 %v292, %v293
      %v295 = vsel %vm254, %v290, 0.0
      %v296 = vadd.f32 %v294, %v295
      %v297 = vsel %vm254, %v291, 0.0
      %v298 = vadd.f32 %v296, %v297
      %v299 = vsel %vm254, %v250, 0.0
      %v300 = vsel %vm254, %v251, 0.0
      %v301 = vadd.f32 %v299, %v300
      %v302 = vsel %vm254, %v252, 0.0
      %v303 = vadd.f32 %v301, %v302
      %v304 = vsel %vm254, %v253, 0.0
      %v305 = vadd.f32 %v303, %v304
      %v306 = vsel %vm254, %v298, 0.0
      %v307 = vrot.slane %v306, 4
      %v308 = vadd.f32 %v306, %v307
      %v309 = vrot.slane %v308, 2
      %v310 = vadd.f32 %v308, %v309
      %v311 = vrot.slane %v310, 1
      %v312 = vadd.f32 %v310, %v311
      %313 = vst [vmem:[%s239] sm:$0x1] %v312
      %v314 = vsel %vm254, %v305, 0.0
      %v315 = vrot.slane %v314, 4
      %v316 = vadd.f32 %v314, %v315
      %v317 = vrot.slane %v316, 2
      %v318 = vadd.f32 %v316, %v317
      %v319 = vrot.slane %v318, 1
      %v320 = vadd.f32 %v318, %v319
      %321 = vst [vmem:[%s245] sm:$0x1] %v320
      %p322 = scmp.lt.s32.totalorder %s19, 1
      %s323 = scalar_select %p322, %s19, 1
      %p324 = scmp.lt.s32.totalorder %s20, 0
      %s325 = scalar_select %p324, %s20, 0
      %s326 = sadd.s32 %s325, %s323
      %s327 = scalar_lea.vmem %s2, %s326
      %p328 = scmp.lt.s32.totalorder %s19, 1
      %s329 = scalar_select %p328, %s19, 1
      %p330 = scmp.lt.s32.totalorder %s20, 0
      %s331 = scalar_select %p330, %s20, 0
      %s332 = sadd.s32 %s331, %s329
      %s333 = scalar_lea.vmem %s3, %s332
      // Predicated region
      $region29: #{soft_cross_entropy_loss.1} parent=27 // pred_check
        %p334 = pneg %p103
      $region30: #{soft_cross_entropy_loss.1} parent=27 // pred_check_branch
        %336 = sbr.rel (%p334) target = $region32
      $region31: #{soft_cross_entropy_loss.1} parent=27 // pred_region
        _
      $region32: #{soft_cross_entropy_loss.1} parent=27 // pred_fallthru
        _
      // Predicated region
      $region33: #{soft_cross_entropy_loss.1} parent=27 // pred_check
        %p337 = pneg %p131
      $region34: #{soft_cross_entropy_loss.1} parent=27 // pred_check_branch
        %339 = sbr.rel (%p337) target = $region36
      $region35: #{soft_cross_entropy_loss.1} parent=27 // pred_region
        _
      $region36: #{soft_cross_entropy_loss.1} parent=27 // pred_fallthru
        _
    $region28: #{soft_cross_entropy_loss.1} parent=5 // pred_fallthru
      _
    %p340 = scmp.le.s32.totalorder 2, %s10
    // Predicated region
    $region37: #{soft_cross_entropy_loss.1} parent=5 // pred_check
      %p341 = pneg %p340
    $region38: #{soft_cross_entropy_loss.1} parent=5 // pred_check_branch
      %343 = sbr.rel (%p341) target = $region40
    $region39: #{soft_cross_entropy_loss.1} parent=5 // pred_region
      %s344 = ssub.s32 %s10, 2
      // Predicated region
      $region41: #{soft_cross_entropy_loss.1} parent=39 // pred_check
        %p345 = pneg %p109
      $region42: #{soft_cross_entropy_loss.1} parent=39 // pred_check_branch
        %347 = sbr.rel (%p345) target = $region44
      $region43: #{soft_cross_entropy_loss.1} parent=39 // pred_region
        %p348 = scmp.lt.s32.totalorder %s21, 1
        %s349 = scalar_select %p348, %s21, 1
        %p350 = scmp.lt.s32.totalorder %s22, 0
        %s351 = scalar_select %p350, %s22, 0
        %s352 = sadd.s32 %s351, %s349
        %s353 = scalar_lea.vmem %s2, %s352
      $region44: #{soft_cross_entropy_loss.1} parent=39 // pred_fallthru
        _
      // Predicated region
      $region45: #{soft_cross_entropy_loss.1} parent=39 // pred_check
        %p354 = pneg %p137
      $region46: #{soft_cross_entropy_loss.1} parent=39 // pred_check_branch
        %356 = sbr.rel (%p354) target = $region48
      $region47: #{soft_cross_entropy_loss.1} parent=39 // pred_region
        %p357 = scmp.lt.s32.totalorder %s21, 1
        %s358 = scalar_select %p357, %s21, 1
        %p359 = scmp.lt.s32.totalorder %s22, 0
        %s360 = scalar_select %p359, %s22, 0
        %s361 = sadd.s32 %s360, %s358
        %s362 = scalar_lea.vmem %s3, %s361
      $region48: #{soft_cross_entropy_loss.1} parent=39 // pred_fallthru
        _
    $region40: #{soft_cross_entropy_loss.1} parent=5 // pred_fallthru
      _
  $region6: #{soft_cross_entropy_loss.1} parent=0 // loop_footer
    %s14 = sadd.s32 1, %s10
  $region7: #{soft_cross_entropy_loss.1} parent=0 // loop_footer_branch
    %9 = sbr.rel target = $region3
  $region8: #{soft_cross_entropy_loss.1} parent=0 // loop_exit
    _

</llo_original>
